<compile_context>
chip_gen: v7x
topology: tpu7x:2x2x1
jax: 0.10.0
libtpu: 0.0.40
codegen_flags: <defaults>
</compile_context>

<pallas_src>
import jax
import jax.numpy as jnp
from jax.experimental import pallas as pl
from jax.experimental.pallas import tpu as pltpu


# ----------------------------- Pallas kernel ---------------------------------
def fused_quant_mlp_kernel(x_ref, wq1_ref, s1_ref, b1_ref,
                           wq2_ref, s2_ref, b2_ref, o_ref):
    """Two fused quantized linears: bf16 MXU matmuls on raw int8 weights,
    per-output-channel scale applied post-matmul in f32 (mathematically identical)."""
    x = x_ref[...].astype(jnp.bfloat16)                        # [tm, K]

    # --- layer 1: int8 -> bf16 is exact; scale commutes with the contraction ---
    w1 = wq1_ref[...].astype(jnp.bfloat16)                     # [K, N1]
    h = jnp.dot(x, w1, preferred_element_type=jnp.float32)     # MXU, f32 accumulate
    h = h * s1_ref[...] + b1_ref[...]                          # f32 epilogue (v5e-safe)
    h = jnp.maximum(h, 0.0)                                    # ReLU (VPU)

    # --- layer 2 ---
    w2 = wq2_ref[...].astype(jnp.bfloat16)                     # [N1, N2]
    o = jnp.dot(h.astype(jnp.bfloat16), w2,
                preferred_element_type=jnp.float32)            # MXU, f32 accumulate
    o = o * s2_ref[...] + b2_ref[...]                          # f32 epilogue

    o_ref[...] = o.astype(o_ref.dtype)


# ------------------------------ JAX glue --------------------------------------
def rtn_quantize(w, bits=8):
    """RTN per-output-channel symmetric quantization. w: [out, in] (PyTorch layout)."""
    qmax = float(2 ** (bits - 1) - 1)                          # 127
    scale = jnp.max(jnp.abs(w), axis=1, keepdims=True) / qmax  # [out, 1]
    scale = jnp.where(scale == 0.0, 1.0, scale)
    wq = jnp.clip(jnp.round(w / scale), -qmax, qmax).astype(jnp.int8)
    return wq, scale.astype(jnp.float32)


def _round_up(x, m):
    return ((x + m - 1) // m) * m


def quant_mlp_forward(x, params, tm=256):
    """x: [B, S, K] f32.  params: RTN-quantized weights/scales/biases of the 2-layer MLP."""
    wq1, s1, b1, wq2, s2, b2 = params
    B, S, K = x.shape
    M = B * S
    x2d = x.reshape(M, K)

    # Transpose PyTorch [out, in] -> kernel [in, out]; scales/biases as [1, out].
    wq1_t, s1_t, b1_t = wq1.T, s1.reshape(1, -1), b1.reshape(1, -1)
    wq2_t, s2_t, b2_t = wq2.T, s2.reshape(1, -1), b2.reshape(1, -1)
    N1 = wq1_t.shape[1]
    N2 = wq2_t.shape[1]

    # Row tile: as large as allowed (single grid step for small M), multiple of 8.
    tm_eff = min(_round_up(tm, 8), _round_up(M, 8))
    Mp = _round_up(M, tm_eff)                                  # pad so no rows are dropped
    if Mp != M:
        x2d = jnp.pad(x2d, ((0, Mp - M), (0, 0)))
    grid = (Mp // tm_eff,)

    flops = 2 * Mp * (K * N1 + N1 * N2)
    bytes_accessed = (4 * Mp * K                 # x (f32)
                      + K * N1 + N1 * N2         # int8 weights
                      + 4 * 2 * (N1 + N2)        # scales + biases (f32)
                      + 4 * Mp * N2)             # output (f32)

    # TODO(synk): for real QuantLinear sizes (e.g. 8k x 8k), tile the output-channel
    # dim of each weight, single-buffer the grid-invariant weight operands, and set
    # vmem_limit_bytes explicitly for v7x's 64 MiB VMEM; moot at this toy size
    # (both int8 weight tiles total ~6 KiB and the grid is a single step).
    out2d = pl.pallas_call(
        fused_quant_mlp_kernel,
        out_shape=jax.ShapeDtypeStruct((Mp, N2), jnp.float32),
        grid_spec=pl.GridSpec(
            grid=grid,
            in_specs=[
                pl.BlockSpec((tm_eff, K), lambda i: (i, 0)),   # x row tile
                pl.BlockSpec((K, N1), lambda i: (0, 0)),       # wq1 (int8), resident
                pl.BlockSpec((1, N1), lambda i: (0, 0)),       # scale1
                pl.BlockSpec((1, N1), lambda i: (0, 0)),       # bias1
                pl.BlockSpec((N1, N2), lambda i: (0, 0)),      # wq2 (int8), resident
                pl.BlockSpec((1, N2), lambda i: (0, 0)),       # scale2
                pl.BlockSpec((1, N2), lambda i: (0, 0)),       # bias2
            ],
            out_specs=pl.BlockSpec((tm_eff, N2), lambda i: (i, 0)),
        ),
        compiler_params=pltpu.CompilerParams(
            dimension_semantics=("parallel",)),
        cost_estimate=pl.CostEstimate(
            flops=flops, transcendentals=0, bytes_accessed=bytes_accessed),
    )(x2d, wq1_t, s1_t, b1_t, wq2_t, s2_t, b2_t)

    return out2d[:M].reshape(B, S, N2)


def reference_forward(x, params):
    """Pure-f32 JAX reference of the quantized MLP forward (dequantized weights)."""
    wq1, s1, b1, wq2, s2, b2 = params
    w1 = wq1.astype(jnp.float32) * s1      # [out, in]
    w2 = wq2.astype(jnp.float32) * s2
    h = jnp.maximum(x @ w1.T + b1, 0.0)
    return h @ w2.T + b2


# TODO(synk): calibration (dataset/tokenizer driven), module substitution and
# from_pretrained checkpoint loading have no Pallas equivalent; only the
# quantized-linear forward hot path is implemented here.

if __name__ == "__main__":
    key = jax.random.PRNGKey(0)
    k_x, k_w1, k_b1, k_w2, k_b2 = jax.random.split(key, 5)

    batch, seq, hidden, mid = 2, 8, 32, 64

    x = jax.random.normal(k_x, (batch, seq, hidden), dtype=jnp.float32)

    # Deterministic full-precision weights (PyTorch nn.Linear layout: [out, in]).
    w1 = jax.random.normal(k_w1, (mid, hidden), dtype=jnp.float32) * 0.1
    b1 = jax.random.normal(k_b1, (mid,), dtype=jnp.float32) * 0.01
    w2 = jax.random.normal(k_w2, (hidden, mid), dtype=jnp.float32) * 0.1
    b2 = jax.random.normal(k_b2, (hidden,), dtype=jnp.float32) * 0.01

    # quant_weight(): RTN int8 per-output-channel symmetric quantization.
    wq1, s1 = rtn_quantize(w1)
    wq2, s2 = rtn_quantize(w2)
    params = (wq1, s1, b1, wq2, s2, b2)

    out = quant_mlp_forward(x, params)
    out = jax.block_until_ready(out)

    ref = reference_forward(x, params)
    assert out.shape == (batch, seq, hidden)
    # Tolerance loosened vs pure-f32 reference because activations enter the MXU in
    # bf16 (weights int8->bf16 are exact; only the activation cast rounds).
    assert jnp.allclose(out, ref, atol=2e-2, rtol=2e-2), "mismatch vs reference"

    print("KERNEL_OK")
</pallas_src>

<mosaic_0001>
module attributes {stable_mosaic.version = 11 : i64} {
  func.func @fused_quant_mlp_kernel(%arg0: i32, %arg1: memref<16x32xf32, #tpu.memory_space<vmem>>, %arg2: memref<32x64xi8, #tpu.memory_space<vmem>>, %arg3: memref<1x64xf32, #tpu.memory_space<vmem>>, %arg4: memref<1x64xf32, #tpu.memory_space<vmem>>, %arg5: memref<64x32xi8, #tpu.memory_space<vmem>>, %arg6: memref<1x32xf32, #tpu.memory_space<vmem>>, %arg7: memref<1x32xf32, #tpu.memory_space<vmem>>, %arg8: memref<16x32xf32, #tpu.memory_space<vmem>>) attributes {dimension_semantics = [#tpu.dimension_semantics<parallel>], iteration_bounds = array<i64: 1>, scalar_prefetch = 0 : i64, scratch_operands = 0 : i64, tpu.core_type = #tpu.core_type<tc>, window_params = [{transform_indices = @transform_0, window_bounds = array<i64: 16, 32>}, {pipeline_mode = #tpu.pipeline_mode<synchronous>, transform_indices = @transform_1, window_bounds = array<i64: 32, 64>}, {pipeline_mode = #tpu.pipeline_mode<synchronous>, transform_indices = @transform_2, window_bounds = array<i64: 1, 64>}, {pipeline_mode = #tpu.pipeline_mode<synchronous>, transform_indices = @transform_3, window_bounds = array<i64: 1, 64>}, {pipeline_mode = #tpu.pipeline_mode<synchronous>, transform_indices = @transform_4, window_bounds = array<i64: 64, 32>}, {pipeline_mode = #tpu.pipeline_mode<synchronous>, transform_indices = @transform_5, window_bounds = array<i64: 1, 32>}, {pipeline_mode = #tpu.pipeline_mode<synchronous>, transform_indices = @transform_6, window_bounds = array<i64: 1, 32>}, {transform_indices = @transform_7, window_bounds = array<i64: 16, 32>}]} {
    %c0 = arith.constant 0 : index
    %c0_0 = arith.constant 0 : index
    %0 = vector.load %arg1[%c0, %c0_0] : memref<16x32xf32, #tpu.memory_space<vmem>>, vector<16x32xf32>
    %1 = arith.truncf %0 : vector<16x32xf32> to vector<16x32xbf16>
    %c0_1 = arith.constant 0 : index
    %c0_2 = arith.constant 0 : index
    %2 = vector.load %arg2[%c0_1, %c0_2] : memref<32x64xi8, #tpu.memory_space<vmem>>, vector<32x64xi8>
    %3 = arith.sitofp %2 : vector<32x64xi8> to vector<32x64xbf16>
    %cst = arith.constant dense<0.000000e+00> : vector<16x64xf32>
    %4 = tpu.matmul %1, %3, %cst {dimension_numbers = #tpu.dot_dimension_numbers<[1], [0], [0], [1], [0, 0, 1, 1], [], []>} : vector<16x32xbf16>, vector<32x64xbf16>, vector<16x64xf32> -> vector<16x64xf32>
    %c0_3 = arith.constant 0 : index
    %c0_4 = arith.constant 0 : index
    %5 = vector.load %arg3[%c0_3, %c0_4] : memref<1x64xf32, #tpu.memory_space<vmem>>, vector<1x64xf32>
    %6 = vector.broadcast %5 : vector<1x64xf32> to vector<16x64xf32>
    %7 = arith.mulf %4, %6 : vector<16x64xf32>
    %c0_5 = arith.constant 0 : index
    %c0_6 = arith.constant 0 : index
    %8 = vector.load %arg4[%c0_5, %c0_6] : memref<1x64xf32, #tpu.memory_space<vmem>>, vector<1x64xf32>
    %9 = vector.broadcast %8 : vector<1x64xf32> to vector<16x64xf32>
    %10 = arith.addf %7, %9 : vector<16x64xf32>
    %cst_7 = arith.constant 0.000000e+00 : f32
    %11 = vector.broadcast %cst_7 : f32 to vector<16x64xf32>
    %12 = arith.maximumf %10, %11 : vector<16x64xf32>
    %c0_8 = arith.constant 0 : index
    %c0_9 = arith.constant 0 : index
    %13 = vector.load %arg5[%c0_8, %c0_9] : memref<64x32xi8, #tpu.memory_space<vmem>>, vector<64x32xi8>
    %14 = arith.sitofp %13 : vector<64x32xi8> to vector<64x32xbf16>
    %15 = arith.truncf %12 : vector<16x64xf32> to vector<16x64xbf16>
    %cst_10 = arith.constant dense<0.000000e+00> : vector<16x32xf32>
    %16 = tpu.matmul %15, %14, %cst_10 {dimension_numbers = #tpu.dot_dimension_numbers<[1], [0], [0], [1], [0, 0, 1, 1], [], []>} : vector<16x64xbf16>, vector<64x32xbf16>, vector<16x32xf32> -> vector<16x32xf32>
    %c0_11 = arith.constant 0 : index
    %c0_12 = arith.constant 0 : index
    %17 = vector.load %arg6[%c0_11, %c0_12] : memref<1x32xf32, #tpu.memory_space<vmem>>, vector<1x32xf32>
    %18 = vector.broadcast %17 : vector<1x32xf32> to vector<16x32xf32>
    %19 = arith.mulf %16, %18 : vector<16x32xf32>
    %c0_13 = arith.constant 0 : index
    %c0_14 = arith.constant 0 : index
    %20 = vector.load %arg7[%c0_13, %c0_14] : memref<1x32xf32, #tpu.memory_space<vmem>>, vector<1x32xf32>
    %21 = vector.broadcast %20 : vector<1x32xf32> to vector<16x32xf32>
    %22 = arith.addf %19, %21 : vector<16x32xf32>
    %c0_15 = arith.constant 0 : index
    %c0_16 = arith.constant 0 : index
    %23 = vector.load %arg8[%c0_15, %c0_16] : memref<16x32xf32, #tpu.memory_space<vmem>>, vector<16x32xf32>
    tpu.vector_store %arg8[%c0_15, %c0_16], %22 {strides = array<i32>} : memref<16x32xf32, #tpu.memory_space<vmem>>, vector<16x32xf32>,
    return
  }
  func.func @transform_0(%arg0: i32) -> (i32, i32) {
    %c0_i32 = arith.constant 0 : i32
    %c0_i32_0 = arith.constant 0 : i32
    return %arg0, %c0_i32 : i32, i32
  }
  func.func @transform_1(%arg0: i32) -> (i32, i32) {
    %c0_i32 = arith.constant 0 : i32
    %c0_i32_0 = arith.constant 0 : i32
    %c0_i32_1 = arith.constant 0 : i32
    return %c0_i32, %c0_i32_0 : i32, i32
  }
  func.func @transform_2(%arg0: i32) -> (i32, i32) {
    %c0_i32 = arith.constant 0 : i32
    %c0_i32_0 = arith.constant 0 : i32
    %c0_i32_1 = arith.constant 0 : i32
    return %c0_i32, %c0_i32_0 : i32, i32
  }
  func.func @transform_3(%arg0: i32) -> (i32, i32) {
    %c0_i32 = arith.constant 0 : i32
    %c0_i32_0 = arith.constant 0 : i32
    %c0_i32_1 = arith.constant 0 : i32
    return %c0_i32, %c0_i32_0 : i32, i32
  }
  func.func @transform_4(%arg0: i32) -> (i32, i32) {
    %c0_i32 = arith.constant 0 : i32
    %c0_i32_0 = arith.constant 0 : i32
    %c0_i32_1 = arith.constant 0 : i32
    return %c0_i32, %c0_i32_0 : i32, i32
  }
  func.func @transform_5(%arg0: i32) -> (i32, i32) {
    %c0_i32 = arith.constant 0 : i32
    %c0_i32_0 = arith.constant 0 : i32
    %c0_i32_1 = arith.constant 0 : i32
    return %c0_i32, %c0_i32_0 : i32, i32
  }
  func.func @transform_6(%arg0: i32) -> (i32, i32) {
    %c0_i32 = arith.constant 0 : i32
    %c0_i32_0 = arith.constant 0 : i32
    %c0_i32_1 = arith.constant 0 : i32
    return %c0_i32, %c0_i32_0 : i32, i32
  }
  func.func @transform_7(%arg0: i32) -> (i32, i32) {
    %c0_i32 = arith.constant 0 : i32
    %c0_i32_0 = arith.constant 0 : i32
    return %arg0, %c0_i32 : i32, i32
  }
}

</mosaic_0001>

<llo_original>
// kernel: tpu_custom_call.1
$region0: #{tpu_custom_call.1}
  #allocation0 [shape = 'u32[]', space=smem, size = 0x4, offset = 0x4, fixed_abs, tag = 'smem constant byte address 0x4 - core index']
  #allocation1 [shape = 'u32[144,128]{1,0:T(1,128)}', space=vmem, size = 0x12000, scoped, tag = 'internal scratch']
  %s0 = inlined_call_operand.vmem [shape: f32[16,32], index: 0, kind: input, shape index: {}]
  %s1 = inlined_call_operand.vmem [shape: s8[32,64], index: 1, kind: input, shape index: {}]
  %s2 = inlined_call_operand.vmem [shape: f32[1,64], index: 2, kind: input, shape index: {}]
  %s3 = inlined_call_operand.vmem [shape: f32[1,64], index: 3, kind: input, shape index: {}]
  %s4 = inlined_call_operand.vmem [shape: s8[64,32], index: 4, kind: input, shape index: {}]
  %s5 = inlined_call_operand.vmem [shape: f32[1,32], index: 5, kind: input, shape index: {}]
  %s6 = inlined_call_operand.vmem [shape: f32[1,32], index: 6, kind: input, shape index: {}]
  %s7 = inlined_call_operand.hbm [shape: f32[16,32], index: 7, kind: output, shape index: {}]
  %s8 = sld [smem:[#allocation0]]
  $region38: #{tpu_custom_call.1} parent=0
    _
  %s10 = ssub.s32 1, %s8
  %s11 = scalar_select 0, %s10, %s8
  $region1: #{tpu_custom_call.1} parent=0
    #allocation2 [shape = 'u8[8192]{0}', space=vmem, size = 0x2000, scoped, tag = 'output window, operand 0, single buffered']
    #allocation3 [shape = 's32[1]{0}', space=sflag, size = 0x4, scoped, tag = 'scoped memory for tpu_custom_call.1']
    %12 = vsyncpa [#allocation3], 0
    // Predicated region
    $region2: #{tpu_custom_call.1} parent=1 // pred_check
      _
    $region3: #{tpu_custom_call.1} parent=1 // pred_check_branch
      %14 = sbr.rel (0) target = $region5
    $region4: #{tpu_custom_call.1} parent=1 // pred_region
      _
    $region5: #{tpu_custom_call.1} parent=1 // pred_fallthru
      _
    // Predicated region
    $region6: #{tpu_custom_call.1} parent=1 // pred_check
      _
    $region7: #{tpu_custom_call.1} parent=1 // pred_check_branch
      %16 = sbr.rel (0) target = $region9
    $region8: #{tpu_custom_call.1} parent=1 // pred_region
      _
    $region9: #{tpu_custom_call.1} parent=1 // pred_fallthru
      _
    // Predicated region
    $region10: #{tpu_custom_call.1} parent=1 // pred_check
      _
    $region11: #{tpu_custom_call.1} parent=1 // pred_check_branch
      %18 = sbr.rel (0) target = $region13
    $region12: #{tpu_custom_call.1} parent=1 // pred_region
      _
    $region13: #{tpu_custom_call.1} parent=1 // pred_fallthru
      _
    // Predicated region
    $region14: #{tpu_custom_call.1} parent=1 // pred_check
      _
    $region15: #{tpu_custom_call.1} parent=1 // pred_check_branch
      %20 = sbr.rel (0) target = $region17
    $region16: #{tpu_custom_call.1} parent=1 // pred_region
      _
    $region17: #{tpu_custom_call.1} parent=1 // pred_fallthru
      _
    // Predicated region
    $region18: #{tpu_custom_call.1} parent=1 // pred_check
      _
    $region19: #{tpu_custom_call.1} parent=1 // pred_check_branch
      %22 = sbr.rel (0) target = $region21
    $region20: #{tpu_custom_call.1} parent=1 // pred_region
      _
    $region21: #{tpu_custom_call.1} parent=1 // pred_fallthru
      _
    // Predicated region
    $region22: #{tpu_custom_call.1} parent=1 // pred_check
      _
    $region23: #{tpu_custom_call.1} parent=1 // pred_check_branch
      %24 = sbr.rel (0) target = $region25
    $region24: #{tpu_custom_call.1} parent=1 // pred_region
      _
    $region25: #{tpu_custom_call.1} parent=1 // pred_fallthru
      _
    // Predicated region
    $region26: #{tpu_custom_call.1} parent=1 // pred_check
      _
    $region27: #{tpu_custom_call.1} parent=1 // pred_check_branch
      %26 = sbr.rel (0) target = $region29
    $region28: #{tpu_custom_call.1} parent=1 // pred_region
      _
    $region29: #{tpu_custom_call.1} parent=1 // pred_fallthru
      _
    %v28 = vld [vmem:[%s0] sm:$0xff]
    %v29 = vld [vmem:[%s0 + $0x8] sm:$0xff]
    %v30 = vpack.c.bf16 %v29, %v28
    %v31 = vld [vmem:[%s1] sm:$0xff]
    %v32 = vunpack.c.l.s8.bf16 %v31
    %v33 = vunpack.c.h.s8.bf16 %v31
    %vm34 = vcmask 261120
    %v36 = vsel %vm34, %v30, 0
    %38 = vmatprep.subr.bf16.mxu0 0
    %39 = vmatpush1.bf16.msra.mxu0 %v32
    %40 = vmatprep.subr.bf16.mxu0 0
    %41 = vmatpush1.bf16.msra.mxu0 %v33
    %42 = vmatprep.subr.bf16.mxu0 0
    %43 = vmatpush1.bf16.msra.mxu0 0
    %44 = vmatprep.subr.bf16.mxu0 0
    %45 = vmatpush1.bf16.msra.mxu0 0
    %46 = vmatprep.subr.bf16.mxu0 0
    %47 = vmatpush1.bf16.msra.mxu0 0
    %48 = vmatprep.subr.bf16.mxu0 0
    %49 = vmatpush1.bf16.msra.mxu0 0
    %50 = vmatprep.subr.bf16.mxu0 0
    %51 = vmatpush1.bf16.msra.mxu0 0
    %52 = vmatprep.subr.bf16.mxu0 0
    %53 = vmatpush1.bf16.msra.mxu0 0
    %54 = vmatprep.subr.bf16.mxu0 0
    %55 = vmatpush1.bf16.msra.mxu0 0
    %56 = vmatprep.subr.bf16.mxu0 0
    %57 = vmatpush1.bf16.msra.mxu0 0
    %58 = vmatprep.subr.bf16.mxu0 0
    %59 = vmatpush1.bf16.msra.mxu0 0
    %60 = vmatprep.subr.bf16.mxu0 0
    %61 = vmatpush1.bf16.msra.mxu0 0
    %62 = vmatprep.subr.bf16.mxu0 0
    %63 = vmatpush1.bf16.msra.mxu0 0
    %64 = vmatprep.subr.bf16.mxu0 0
    %65 = vmatpush1.bf16.msra.mxu0 0
    %66 = vmatprep.subr.bf16.mxu0 0
    %67 = vmatpush1.bf16.msra.mxu0 0
    %68 = vmatprep.subr.bf16.mxu0 0
    %69 = vmatpush1.bf16.msra.mxu0 0
    %70 = vmatprep.mubr.bf16.mxu0 0
    %71 = vmatmul.mubr.bf16.gmra.mrb[0].mxu0 %v36
    %v72 = vpop.f32.mrb[0].mxu0
    %v73 = vadd.f32 0.0, %v72
    %v74 = vpop.f32.mrb[0].mxu0
    %v75 = vpop.f32.mrb[0].mxu0
    %v76 = vadd.f32 0.0, %v75
    %v77 = vpop.f32.mrb[0].mxu0
    %78 = vdwg.mxu0
    %v79 = vld [vmem:[%s2] sm:$0x1]
    %v81 = vlaneseq
    %v82 = vshrl.u32 %v81, 7
    %v83 = vsub.s32 0, %v82
    %v84 = vrot.slane %v79, %v83
    %v86 = vmul.f32 %v73, %v84
    %v87 = vmul.f32 %v76, %v84
    %v88 = vld [vmem:[%s3] sm:$0x1]
    %v90 = vlaneseq
    %v91 = vshrl.u32 %v90, 7
    %v92 = vsub.s32 0, %v91
    %v93 = vrot.slane %v88, %v92
    %v95 = vadd.f32 %v86, %v93
    %v96 = vadd.f32 %v87, %v93
    %v97 = vmax.f32 %v95, 0.0
    %v98 = vmax.f32 %v96, 0.0
    %v99 = vld [vmem:[%s4] sm:$0xff]
    %v100 = vld [vmem:[%s4 + $0x8] sm:$0xff]
    %v101 = vunpack.c.l.s8.bf16 %v99
    %v102 = vunpack.c.h.s8.bf16 %v99
    %v103 = vunpack.c.l.s8.bf16 %v100
    %v104 = vunpack.c.h.s8.bf16 %v100
    %v105 = vpack.c.bf16 %v98, %v97
    %vm106 = vcmask 523264
    %v108 = vsel %vm106, %v105, 0
    %110 = vmatprep.subr.bf16.mxu0 0
    %111 = vmatpush1.bf16.msra.mxu0 %v101
    %112 = vmatprep.subr.bf16.mxu0 0
    %113 = vmatpush1.bf16.msra.mxu0 %v102
    %114 = vmatprep.subr.bf16.mxu0 0
    %115 = vmatpush1.bf16.msra.mxu0 %v103
    %116 = vmatprep.subr.bf16.mxu0 0
    %117 = vmatpush1.bf16.msra.mxu0 %v104
    %118 = vmatprep.subr.bf16.mxu0 0
    %119 = vmatpush1.bf16.msra.mxu0 0
    %120 = vmatprep.subr.bf16.mxu0 0
    %121 = vmatpush1.bf16.msra.mxu0 0
    %122 = vmatprep.subr.bf16.mxu0 0
    %123 = vmatpush1.bf16.msra.mxu0 0
    %124 = vmatprep.subr.bf16.mxu0 0
    %125 = vmatpush1.bf16.msra.mxu0 0
    %126 = vmatprep.subr.bf16.mxu0 0
    %127 = vmatpush1.bf16.msra.mxu0 0
    %128 = vmatprep.subr.bf16.mxu0 0
    %129 = vmatpush1.bf16.msra.mxu0 0
    %130 = vmatprep.subr.bf16.mxu0 0
    %131 = vmatpush1.bf16.msra.mxu0 0
    %132 = vmatprep.subr.bf16.mxu0 0
    %133 = vmatpush1.bf16.msra.mxu0 0
    %134 = vmatprep.subr.bf16.mxu0 0
    %135 = vmatpush1.bf16.msra.mxu0 0
    %136 = vmatprep.subr.bf16.mxu0 0
    %137 = vmatpush1.bf16.msra.mxu0 0
    %138 = vmatprep.subr.bf16.mxu0 0
    %139 = vmatpush1.bf16.msra.mxu0 0
    %140 = vmatprep.subr.bf16.mxu0 0
    %141 = vmatpush1.bf16.msra.mxu0 0
    %142 = vmatprep.mubr.bf16.mxu0 0
    %143 = vmatmul.mubr.bf16.gmra.mrb[0].mxu0 %v108
    %v144 = vpop.f32.mrb[0].mxu0
    %v145 = vadd.f32 0.0, %v144
    %v146 = vpop.f32.mrb[0].mxu0
    %v147 = vpop.f32.mrb[0].mxu0
    %v148 = vadd.f32 0.0, %v147
    %v149 = vpop.f32.mrb[0].mxu0
    %150 = vdwg.mxu0
    %v151 = vld [vmem:[%s5] sm:$0x1]
    %v153 = vlaneseq
    %v154 = vshrl.u32 %v153, 7
    %v155 = vsub.s32 0, %v154
    %v156 = vrot.slane %v151, %v155
    %v158 = vmul.f32 %v145, %v156
    %v159 = vmul.f32 %v148, %v156
    %v160 = vld [vmem:[%s6] sm:$0x1]
    %v162 = vlaneseq
    %v163 = vshrl.u32 %v162, 7
    %v164 = vsub.s32 0, %v163
    %v165 = vrot.slane %v160, %v164
    %v167 = vadd.f32 %v158, %v165
    %v168 = vadd.f32 %v159, %v165
    %169 = vst.msk [vmem:[#allocation2] sm:$0xff] %vm34, %v167
    %170 = vst.msk [vmem:[#allocation2 + $0x8] sm:$0xff] %vm34, %v168
    // Predicated region
    $region30: #{tpu_custom_call.1} parent=1 // pred_check
      _
    $region31: #{tpu_custom_call.1} parent=1 // pred_check_branch
      %172 = sbr.rel (0) target = $region33
    $region32: #{tpu_custom_call.1} parent=1 // pred_region
      %s174 = ssub.s32 256, 256
      %175 = vsyncadd [#allocation3], %s174
      %s176 = sshll.u32 [#allocation2], 4
      %s177 = int_to_ptr.vmem [resolvable:$true] %s176
      %182 = dma.vmem_to_hbm [thread:$0]  %s177, 256, %s7, [#allocation3], 128, 128, 8
    $region33: #{tpu_custom_call.1} parent=1 // pred_fallthru
      _
    // Predicated region
    $region34: #{tpu_custom_call.1} parent=1 // pred_check
      _
    $region35: #{tpu_custom_call.1} parent=1 // pred_check_branch
      %184 = sbr.rel (0) target = $region37
    $region36: #{tpu_custom_call.1} parent=1 // pred_region
      %185 = dma.done [#allocation3], 256
    $region37: #{tpu_custom_call.1} parent=1 // pred_fallthru
      _
    %186 = vsyncpa [#allocation3], 1

</llo_original>
